<compile_context>
chip_gen: v5e
topology: v5e:2x2
jax: 0.10.0
libtpu: 0.0.40
codegen_flags: <defaults>
</compile_context>

<pallas_src>
import functools

import jax
import jax.numpy as jnp
from jax.experimental import pallas as pl
from jax.experimental.pallas import tpu as pltpu


def _round_up(x, m):
    return (x + m - 1) // m * m


def _se_gating_kernel(emb_ref, w1_ref, b1_ref, g_ref, beta_ref, w2_ref, b2_ref,
                      out_ref, *, eps, h_real):
    emb = emb_ref[...]                                   # (tm, Dp) input dtype
    emb_f32 = emb.astype(jnp.float32)

    # Linear 1: Dp -> Hp on the MXU (bf16 inputs, f32 accumulation if enabled).
    h = jnp.dot(emb.astype(w1_ref.dtype), w1_ref[...],
                preferred_element_type=jnp.float32)
    h = h + b1_ref[...]                                  # (tm, Hp) f32; pad cols are 0

    # LayerNorm over the REAL H columns only.  Pad columns of h are exactly 0
    # (zero weight columns, zero bias pad), so they contribute nothing to the
    # sums; the lane mask keeps them out of the variance.  Biased variance +
    # eps inside rsqrt, matching nn.LayerNorm.
    hp = h.shape[-1]
    col = jax.lax.broadcasted_iota(jnp.int32, (1, hp), 1)
    lane_mask = (col < h_real).astype(jnp.float32)       # (1, Hp)

    inv_h = jnp.float32(1.0 / h_real)
    mean = jnp.sum(h, axis=-1, keepdims=True) * inv_h
    centered = (h - mean) * lane_mask                    # pad columns -> 0
    var = jnp.sum(centered * centered, axis=-1, keepdims=True) * inv_h
    inv = jax.lax.rsqrt(var + eps)
    hn = centered * (inv * g_ref[...]) + beta_ref[...]   # gamma/beta pad = 0

    # GELU, exact erf form (PyTorch nn.GELU default).
    a = 0.5 * hn * (1.0 + jax.lax.erf(hn * 0.7071067811865476))

    # Linear 2: Hp -> Dp on the MXU.
    logits = jnp.dot(a.astype(w2_ref.dtype), w2_ref[...],
                     preferred_element_type=jnp.float32)
    logits = logits + b2_ref[...]                        # (tm, Dp)

    # Sigmoid gate and elementwise modulation of the input.  Pad columns of emb
    # are 0, so padded output columns are exactly 0.
    gate = jax.nn.sigmoid(logits)
    out_ref[...] = (emb_f32 * gate).astype(out_ref.dtype)


def _pick_tile_rows(tile_rows, rows, Dp, Hp, in_bytes, out_bytes, w_bytes):
    """Largest row tile (multiple of 8) that keeps the VMEM working set small."""
    budget = 20 * 1024 * 1024                                   # conservative
    weights = 2 * (Dp * Hp + Hp * Dp) * w_bytes                 # double-buffered
    per_row = 2 * Dp * in_bytes + 2 * Dp * out_bytes + 4 * (Hp + Dp) * 4
    avail = max(budget - weights, per_row * 8)
    tm_cap = max(8, (avail // per_row) // 8 * 8)
    return int(min(_round_up(tile_rows, 8), tm_cap, _round_up(rows, 8)))


def se_gating_l(emb, params, *, tile_rows=512, eps=1e-6, use_bf16_matmul=True):
    """emb: (..., D) array. params: dict with w1 (D,H), b1, gamma, beta, w2 (H,D), b2."""
    orig_shape = emb.shape
    orig_dtype = emb.dtype
    D = orig_shape[-1]
    H = D // 8
    assert H >= 1, "input_dim must be >= 8"

    x = emb.reshape(-1, D)
    rows = x.shape[0]

    # Lane-dense padded dims.
    Dp = _round_up(D, 128)
    Hp = _round_up(H, 128)

    wdt = jnp.bfloat16 if use_bf16_matmul else jnp.float32
    in_bytes = jnp.dtype(orig_dtype).itemsize
    tm = _pick_tile_rows(tile_rows, rows, Dp, Hp, in_bytes, in_bytes,
                         jnp.dtype(wdt).itemsize)
    rows_p = _round_up(rows, tm)

    if rows_p != rows or Dp != D:
        x = jnp.pad(x, ((0, rows_p - rows), (0, Dp - D)))

    w1 = jnp.pad(params["w1"].astype(jnp.float32),
                 ((0, Dp - D), (0, Hp - H))).astype(wdt)          # (Dp, Hp)
    b1 = jnp.pad(params["b1"].astype(jnp.float32), ((0, Hp - H),)).reshape(1, Hp)
    gamma = jnp.pad(params["gamma"].astype(jnp.float32), ((0, Hp - H),)).reshape(1, Hp)
    beta = jnp.pad(params["beta"].astype(jnp.float32), ((0, Hp - H),)).reshape(1, Hp)
    w2 = jnp.pad(params["w2"].astype(jnp.float32),
                 ((0, Hp - H), (0, Dp - D))).astype(wdt)          # (Hp, Dp)
    b2 = jnp.pad(params["b2"].astype(jnp.float32), ((0, Dp - D),)).reshape(1, Dp)

    kernel = functools.partial(_se_gating_kernel, eps=eps, h_real=H)

    out = pl.pallas_call(
        kernel,
        out_shape=jax.ShapeDtypeStruct((rows_p, Dp), orig_dtype),
        grid_spec=pltpu.PrefetchScalarGridSpec(
            num_scalar_prefetch=0,
            grid=(rows_p // tm,),
            in_specs=[
                pl.BlockSpec((tm, Dp), lambda i: (i, 0)),   # emb tile
                pl.BlockSpec((Dp, Hp), lambda i: (0, 0)),   # w1 (grid-resident)
                pl.BlockSpec((1, Hp), lambda i: (0, 0)),    # b1
                pl.BlockSpec((1, Hp), lambda i: (0, 0)),    # gamma
                pl.BlockSpec((1, Hp), lambda i: (0, 0)),    # beta
                pl.BlockSpec((Hp, Dp), lambda i: (0, 0)),   # w2 (grid-resident)
                pl.BlockSpec((1, Dp), lambda i: (0, 0)),    # b2
            ],
            out_specs=pl.BlockSpec((tm, Dp), lambda i: (i, 0)),
        ),
        compiler_params=pltpu.CompilerParams(
            dimension_semantics=("parallel",),
            vmem_limit_bytes=48 * 1024 * 1024,
        ),
    )(x, w1, b1, gamma, beta, w2, b2)

    out = out[:rows, :D]
    return out.reshape(orig_shape)


def _reference(emb, params, eps=1e-6):
    x = emb.astype(jnp.float32)
    h = jnp.dot(x, params["w1"].astype(jnp.float32),
                preferred_element_type=jnp.float32) + params["b1"]
    mean = jnp.mean(h, axis=-1, keepdims=True)
    var = jnp.mean((h - mean) ** 2, axis=-1, keepdims=True)
    hn = (h - mean) * jax.lax.rsqrt(var + eps) * params["gamma"] + params["beta"]
    a = jax.nn.gelu(hn, approximate=False)
    logits = jnp.dot(a, params["w2"].astype(jnp.float32),
                     preferred_element_type=jnp.float32) + params["b2"]
    return x * jax.nn.sigmoid(logits)


def init_params(key, input_dim):
    H = input_dim // 8
    k1, k2, k3, k4 = jax.random.split(key, 4)
    s1 = 1.0 / jnp.sqrt(input_dim)
    s2 = 1.0 / jnp.sqrt(H)
    return {
        "w1": jax.random.uniform(k1, (input_dim, H), jnp.float32, -s1, s1),
        "b1": jax.random.uniform(k2, (H,), jnp.float32, -s1, s1),
        "gamma": jnp.ones((H,), jnp.float32),
        "beta": jnp.zeros((H,), jnp.float32),
        "w2": jax.random.uniform(k3, (H, input_dim), jnp.float32, -s2, s2),
        "b2": jax.random.uniform(k4, (input_dim,), jnp.float32, -s2, s2),
    }


if __name__ == "__main__":
    key = jax.random.PRNGKey(0)
    k_emb, k_par = jax.random.split(key)

    batch, seq, input_dim = 2, 8, 32            # H = input_dim // 8 = 4
    emb = jax.random.normal(k_emb, (batch, seq, input_dim), jnp.float32)
    params = init_params(k_par, input_dim)

    ref_f32 = _reference(emb, params)

    # Exact-precision path (f32 matmuls) -> tight check against f32 reference.
    out_f32 = jax.block_until_ready(se_gating_l(emb, params, use_bf16_matmul=False))
    assert out_f32.shape == emb.shape
    assert jnp.allclose(out_f32, ref_f32, atol=1e-5, rtol=1e-5), "f32 path mismatch"

    # Default fast path (bf16 matmul inputs, f32 accumulation) -> loose check.
    out_bf = jax.block_until_ready(se_gating_l(emb, params))
    assert out_bf.shape == emb.shape
    assert jnp.allclose(out_bf, ref_f32, atol=3e-2, rtol=3e-2), "bf16 path mismatch"

    print("KERNEL_OK")
</pallas_src>

<mosaic_0001>
module attributes {stable_mosaic.version = 11 : i64} {
  func.func @_se_gating_kernel(%arg0: i32, %arg1: memref<16x128xf32, #tpu.memory_space<vmem>>, %arg2: memref<128x128xf32, #tpu.memory_space<vmem>>, %arg3: memref<1x128xf32, #tpu.memory_space<vmem>>, %arg4: memref<1x128xf32, #tpu.memory_space<vmem>>, %arg5: memref<1x128xf32, #tpu.memory_space<vmem>>, %arg6: memref<128x128xf32, #tpu.memory_space<vmem>>, %arg7: memref<1x128xf32, #tpu.memory_space<vmem>>, %arg8: memref<16x128xf32, #tpu.memory_space<vmem>>) attributes {dimension_semantics = [#tpu.dimension_semantics<parallel>], iteration_bounds = array<i64: 1>, scalar_prefetch = 0 : i64, scratch_operands = 0 : i64, tpu.core_type = #tpu.core_type<tc>, window_params = [{transform_indices = @transform_0, window_bounds = array<i64: 16, 128>}, {pipeline_mode = #tpu.pipeline_mode<synchronous>, transform_indices = @transform_1, window_bounds = array<i64: 128, 128>}, {pipeline_mode = #tpu.pipeline_mode<synchronous>, transform_indices = @transform_2, window_bounds = array<i64: 1, 128>}, {pipeline_mode = #tpu.pipeline_mode<synchronous>, transform_indices = @transform_3, window_bounds = array<i64: 1, 128>}, {pipeline_mode = #tpu.pipeline_mode<synchronous>, transform_indices = @transform_4, window_bounds = array<i64: 1, 128>}, {pipeline_mode = #tpu.pipeline_mode<synchronous>, transform_indices = @transform_5, window_bounds = array<i64: 128, 128>}, {pipeline_mode = #tpu.pipeline_mode<synchronous>, transform_indices = @transform_6, window_bounds = array<i64: 1, 128>}, {transform_indices = @transform_7, window_bounds = array<i64: 16, 128>}]} {
    %c0 = arith.constant 0 : index
    %c0_0 = arith.constant 0 : index
    %0 = vector.load %arg1[%c0, %c0_0] : memref<16x128xf32, #tpu.memory_space<vmem>>, vector<16x128xf32>
    %c0_1 = arith.constant 0 : index
    %c0_2 = arith.constant 0 : index
    %1 = vector.load %arg2[%c0_1, %c0_2] : memref<128x128xf32, #tpu.memory_space<vmem>>, vector<128x128xf32>
    %cst = arith.constant dense<0.000000e+00> : vector<16x128xf32>
    %2 = tpu.matmul %0, %1, %cst {dimension_numbers = #tpu.dot_dimension_numbers<[1], [0], [0], [1], [0, 0, 1, 1], [], []>} : vector<16x128xf32>, vector<128x128xf32>, vector<16x128xf32> -> vector<16x128xf32>
    %c0_3 = arith.constant 0 : index
    %c0_4 = arith.constant 0 : index
    %3 = vector.load %arg3[%c0_3, %c0_4] : memref<1x128xf32, #tpu.memory_space<vmem>>, vector<1x128xf32>
    %4 = vector.broadcast %3 : vector<1x128xf32> to vector<16x128xf32>
    %5 = arith.addf %2, %4 : vector<16x128xf32>
    %6 = tpu.iota {dimensions = array<i32: 1>} : vector<1x128xi32>
    %c4_i32 = arith.constant 4 : i32
    %7 = vector.broadcast %c4_i32 : i32 to vector<1x128xi32>
    %8 = arith.cmpi slt, %6, %7 : vector<1x128xi32>
    %9 = arith.extui %8 : vector<1x128xi1> to vector<1x128xi32>
    %10 = arith.sitofp %9 : vector<1x128xi32> to vector<1x128xf32>
    %cst_5 = arith.constant dense<0.000000e+00> : vector<16xf32>
    %11 = vector.multi_reduction <add>, %5, %cst_5 [1] : vector<16x128xf32> to vector<16xf32>
    %12 = vector.shape_cast %11 : vector<16xf32> to vector<16x1xf32>
    %cst_6 = arith.constant 2.500000e-01 : f32
    %13 = vector.broadcast %cst_6 : f32 to vector<16x1xf32>
    %14 = arith.mulf %12, %13 : vector<16x1xf32>
    %15 = vector.broadcast %14 : vector<16x1xf32> to vector<16x128xf32>
    %16 = arith.subf %5, %15 : vector<16x128xf32>
    %17 = vector.broadcast %10 : vector<1x128xf32> to vector<16x128xf32>
    %18 = arith.mulf %16, %17 : vector<16x128xf32>
    %19 = arith.mulf %18, %18 : vector<16x128xf32>
    %cst_7 = arith.constant dense<0.000000e+00> : vector<16xf32>
    %20 = vector.multi_reduction <add>, %19, %cst_7 [1] : vector<16x128xf32> to vector<16xf32>
    %21 = vector.shape_cast %20 : vector<16xf32> to vector<16x1xf32>
    %cst_8 = arith.constant 2.500000e-01 : f32
    %22 = vector.broadcast %cst_8 : f32 to vector<16x1xf32>
    %23 = arith.mulf %21, %22 : vector<16x1xf32>
    %cst_9 = arith.constant 9.99999997E-7 : f32
    %24 = vector.broadcast %cst_9 : f32 to vector<16x1xf32>
    %25 = arith.addf %23, %24 : vector<16x1xf32>
    %26 = math.rsqrt %25 : vector<16x1xf32>
    %c0_10 = arith.constant 0 : index
    %c0_11 = arith.constant 0 : index
    %27 = vector.load %arg4[%c0_10, %c0_11] : memref<1x128xf32, #tpu.memory_space<vmem>>, vector<1x128xf32>
    %28 = vector.broadcast %26 : vector<16x1xf32> to vector<16x128xf32>
    %29 = vector.broadcast %27 : vector<1x128xf32> to vector<16x128xf32>
    %30 = arith.mulf %28, %29 : vector<16x128xf32>
    %31 = arith.mulf %18, %30 : vector<16x128xf32>
    %c0_12 = arith.constant 0 : index
    %c0_13 = arith.constant 0 : index
    %32 = vector.load %arg5[%c0_12, %c0_13] : memref<1x128xf32, #tpu.memory_space<vmem>>, vector<1x128xf32>
    %33 = vector.broadcast %32 : vector<1x128xf32> to vector<16x128xf32>
    %34 = arith.addf %31, %33 : vector<16x128xf32>
    %cst_14 = arith.constant 5.000000e-01 : f32
    %35 = vector.broadcast %cst_14 : f32 to vector<16x128xf32>
    %36 = arith.mulf %35, %34 : vector<16x128xf32>
    %cst_15 = arith.constant 0.707106769 : f32
    %37 = vector.broadcast %cst_15 : f32 to vector<16x128xf32>
    %38 = arith.mulf %34, %37 : vector<16x128xf32>
    %39 = math.erf %38 : vector<16x128xf32>
    %cst_16 = arith.constant 1.000000e+00 : f32
    %40 = vector.broadcast %cst_16 : f32 to vector<16x128xf32>
    %41 = arith.addf %40, %39 : vector<16x128xf32>
    %42 = arith.mulf %36, %41 : vector<16x128xf32>
    %c0_17 = arith.constant 0 : index
    %c0_18 = arith.constant 0 : index
    %43 = vector.load %arg6[%c0_17, %c0_18] : memref<128x128xf32, #tpu.memory_space<vmem>>, vector<128x128xf32>
    %cst_19 = arith.constant dense<0.000000e+00> : vector<16x128xf32>
    %44 = tpu.matmul %42, %43, %cst_19 {dimension_numbers = #tpu.dot_dimension_numbers<[1], [0], [0], [1], [0, 0, 1, 1], [], []>} : vector<16x128xf32>, vector<128x128xf32>, vector<16x128xf32> -> vector<16x128xf32>
    %c0_20 = arith.constant 0 : index
    %c0_21 = arith.constant 0 : index
    %45 = vector.load %arg7[%c0_20, %c0_21] : memref<1x128xf32, #tpu.memory_space<vmem>>, vector<1x128xf32>
    %46 = vector.broadcast %45 : vector<1x128xf32> to vector<16x128xf32>
    %47 = arith.addf %44, %46 : vector<16x128xf32>
    %48 = arith.negf %47 : vector<16x128xf32>
    %49 = math.exp %48 : vector<16x128xf32>
    %cst_22 = arith.constant 1.000000e+00 : f32
    %50 = vector.broadcast %cst_22 : f32 to vector<16x128xf32>
    %51 = arith.addf %50, %49 : vector<16x128xf32>
    %52 = arith.divf %50, %51 : vector<16x128xf32>
    %53 = arith.mulf %0, %52 : vector<16x128xf32>
    %c0_23 = arith.constant 0 : index
    %c0_24 = arith.constant 0 : index
    %54 = vector.load %arg8[%c0_23, %c0_24] : memref<16x128xf32, #tpu.memory_space<vmem>>, vector<16x128xf32>
    tpu.vector_store %arg8[%c0_23, %c0_24], %53 {strides = array<i32>} : memref<16x128xf32, #tpu.memory_space<vmem>>, vector<16x128xf32>,
    return
  }
  func.func @transform_0(%arg0: i32) -> (i32, i32) {
    %c0_i32 = arith.constant 0 : i32
    %c0_i32_0 = arith.constant 0 : i32
    return %arg0, %c0_i32 : i32, i32
  }
  func.func @transform_1(%arg0: i32) -> (i32, i32) {
    %c0_i32 = arith.constant 0 : i32
    %c0_i32_0 = arith.constant 0 : i32
    %c0_i32_1 = arith.constant 0 : i32
    return %c0_i32, %c0_i32_0 : i32, i32
  }
  func.func @transform_2(%arg0: i32) -> (i32, i32) {
    %c0_i32 = arith.constant 0 : i32
    %c0_i32_0 = arith.constant 0 : i32
    %c0_i32_1 = arith.constant 0 : i32
    return %c0_i32, %c0_i32_0 : i32, i32
  }
  func.func @transform_3(%arg0: i32) -> (i32, i32) {
    %c0_i32 = arith.constant 0 : i32
    %c0_i32_0 = arith.constant 0 : i32
    %c0_i32_1 = arith.constant 0 : i32
    return %c0_i32, %c0_i32_0 : i32, i32
  }
  func.func @transform_4(%arg0: i32) -> (i32, i32) {
    %c0_i32 = arith.constant 0 : i32
    %c0_i32_0 = arith.constant 0 : i32
    %c0_i32_1 = arith.constant 0 : i32
    return %c0_i32, %c0_i32_0 : i32, i32
  }
  func.func @transform_5(%arg0: i32) -> (i32, i32) {
    %c0_i32 = arith.constant 0 : i32
    %c0_i32_0 = arith.constant 0 : i32
    %c0_i32_1 = arith.constant 0 : i32
    return %c0_i32, %c0_i32_0 : i32, i32
  }
  func.func @transform_6(%arg0: i32) -> (i32, i32) {
    %c0_i32 = arith.constant 0 : i32
    %c0_i32_0 = arith.constant 0 : i32
    %c0_i32_1 = arith.constant 0 : i32
    return %c0_i32, %c0_i32_0 : i32, i32
  }
  func.func @transform_7(%arg0: i32) -> (i32, i32) {
    %c0_i32 = arith.constant 0 : i32
    %c0_i32_0 = arith.constant 0 : i32
    return %arg0, %c0_i32 : i32, i32
  }
}

</mosaic_0001>

<llo_original>
// kernel: tpu_custom_call.1
$region0: #{tpu_custom_call.1}
  #allocation0 [shape = 'u32[]', space=smem, size = 0x4, offset = 0x4, fixed_abs, tag = 'smem constant byte address 0x4 - core index']
  #allocation1 [shape = 'u32[72,128]{1,0:T(1,128)}', space=vmem, size = 0x9000, scoped, tag = 'internal scratch']
  %s0 = inlined_call_operand.hbm [shape: f32[16,128], index: 0, kind: input, shape index: {}]
  %s1 = inlined_call_operand.hbm [shape: f32[128,128], index: 1, kind: input, shape index: {}]
  %s2 = inlined_call_operand.vmem [shape: f32[1,128], index: 2, kind: input, shape index: {}]
  %s3 = inlined_call_operand.vmem [shape: f32[1,128], index: 3, kind: input, shape index: {}]
  %s4 = inlined_call_operand.vmem [shape: f32[1,128], index: 4, kind: input, shape index: {}]
  %s5 = inlined_call_operand.hbm [shape: f32[128,128], index: 5, kind: input, shape index: {}]
  %s6 = inlined_call_operand.vmem [shape: f32[1,128], index: 6, kind: input, shape index: {}]
  %s7 = inlined_call_operand.hbm [shape: f32[16,128], index: 7, kind: output, shape index: {}]
  %s8 = sld [smem:[#allocation0]]
  $region50: #{tpu_custom_call.1} parent=0
    _
  %s10 = ssub.s32 1, %s8
  %s11 = scalar_select 0, %s10, %s8
  $region1: #{tpu_custom_call.1} parent=0
    #allocation2 [shape = 'u8[8192]{0}', space=vmem, size = 0x2000, scoped, tag = 'input window, operand 0, single buffered']
    #allocation3 [shape = 's32[1]{0}', space=sflag, size = 0x4, scoped, tag = 'scoped memory for tpu_custom_call.1']
    #allocation4 [shape = 's32[1]{0}', space=sflag, size = 0x4, scoped, tag = 'scoped memory for tpu_custom_call.1']
    #allocation5 [shape = 'u8[65536]{0}', space=vmem, size = 0x10000, scoped, tag = 'input window, operand 1, single buffered']
    #allocation6 [shape = 's32[1]{0}', space=sflag, size = 0x4, scoped, tag = 'scoped memory for tpu_custom_call.1']
    #allocation7 [shape = 'u8[65536]{0}', space=vmem, size = 0x10000, scoped, tag = 'input window, operand 5, single buffered']
    #allocation8 [shape = 'u8[8192]{0}', space=vmem, size = 0x2000, scoped, tag = 'output window, operand 0, single buffered']
    %12 = vsyncpa [#allocation3], 0
    %13 = vsyncpa [#allocation6], 0
    %14 = vsyncpa [#allocation4], 0
    // Predicated region
    $region2: #{tpu_custom_call.1} parent=1 // pred_check
      _
    $region3: #{tpu_custom_call.1} parent=1 // pred_check_branch
      %16 = sbr.rel (0) target = $region5
    $region4: #{tpu_custom_call.1} parent=1 // pred_region
      %18 = vsyncadd [#allocation3], 0
      %s19 = sshll.u32 %s0, 4
      %s20 = int_to_ptr.hbm [resolvable:$true] %s19
      %s21 = sshll.u32 [#allocation2], 4
      %s22 = int_to_ptr.vmem [resolvable:$true] %s21
      %27 = dma.hbm_to_vmem [thread:$0]  %s20, 256, %s22, [#allocation3], 128, 128, 8
    $region5: #{tpu_custom_call.1} parent=1 // pred_fallthru
      _
    // Predicated region
    $region6: #{tpu_custom_call.1} parent=1 // pred_check
      _
    $region7: #{tpu_custom_call.1} parent=1 // pred_check_branch
      %29 = sbr.rel (0) target = $region9
    $region8: #{tpu_custom_call.1} parent=1 // pred_region
      %31 = vsyncadd [#allocation6], 0
      %s32 = sshll.u32 %s1, 4
      %s33 = int_to_ptr.hbm [resolvable:$true] %s32
      %s34 = sshll.u32 [#allocation5], 4
      %s35 = int_to_ptr.vmem [resolvable:$true] %s34
      %40 = dma.hbm_to_vmem [thread:$0]  %s33, 2048, %s35, [#allocation6], 128, 128, 8
    $region9: #{tpu_custom_call.1} parent=1 // pred_fallthru
      _
    // Predicated region
    $region10: #{tpu_custom_call.1} parent=1 // pred_check
      _
    $region11: #{tpu_custom_call.1} parent=1 // pred_check_branch
      %42 = sbr.rel (0) target = $region13
    $region12: #{tpu_custom_call.1} parent=1 // pred_region
      _
    $region13: #{tpu_custom_call.1} parent=1 // pred_fallthru
      _
    // Predicated region
    $region14: #{tpu_custom_call.1} parent=1 // pred_check
      _
    $region15: #{tpu_custom_call.1} parent=1 // pred_check_branch
      %44 = sbr.rel (0) target = $region17
    $region16: #{tpu_custom_call.1} parent=1 // pred_region
      _
    $region17: #{tpu_custom_call.1} parent=1 // pred_fallthru
      _
    // Predicated region
    $region18: #{tpu_custom_call.1} parent=1 // pred_check
      _
    $region19: #{tpu_custom_call.1} parent=1 // pred_check_branch
      %46 = sbr.rel (0) target = $region21
    $region20: #{tpu_custom_call.1} parent=1 // pred_region
      _
    $region21: #{tpu_custom_call.1} parent=1 // pred_fallthru
      _
    // Predicated region
    $region22: #{tpu_custom_call.1} parent=1 // pred_check
      _
    $region23: #{tpu_custom_call.1} parent=1 // pred_check_branch
      %48 = sbr.rel (0) target = $region25
    $region24: #{tpu_custom_call.1} parent=1 // pred_region
      %50 = vsyncadd [#allocation6], 0
      %s51 = sshll.u32 %s5, 4
      %s52 = int_to_ptr.hbm [resolvable:$true] %s51
      %s53 = sshll.u32 [#allocation7], 4
      %s54 = int_to_ptr.vmem [resolvable:$true] %s53
      %59 = dma.hbm_to_vmem [thread:$0]  %s52, 2048, %s54, [#allocation6], 128, 128, 8
    $region25: #{tpu_custom_call.1} parent=1 // pred_fallthru
      _
    // Predicated region
    $region26: #{tpu_custom_call.1} parent=1 // pred_check
      _
    $region27: #{tpu_custom_call.1} parent=1 // pred_check_branch
      %61 = sbr.rel (0) target = $region29
    $region28: #{tpu_custom_call.1} parent=1 // pred_region
      _
    $region29: #{tpu_custom_call.1} parent=1 // pred_fallthru
      _
    // Predicated region
    $region30: #{tpu_custom_call.1} parent=1 // pred_check
      _
    $region31: #{tpu_custom_call.1} parent=1 // pred_check_branch
      %63 = sbr.rel (0) target = $region33
    $region32: #{tpu_custom_call.1} parent=1 // pred_region
      %65 = dma.done [#allocation3], 256
    $region33: #{tpu_custom_call.1} parent=1 // pred_fallthru
      _
    // Predicated region
    $region34: #{tpu_custom_call.1} parent=1 // pred_check
      _
    $region35: #{tpu_custom_call.1} parent=1 // pred_check_branch
      %67 = sbr.rel (0) target = $region37
    $region36: #{tpu_custom_call.1} parent=1 // pred_region
      %69 = dma.done [#allocation6], 2048
    $region37: #{tpu_custom_call.1} parent=1 // pred_fallthru
      _
    // Predicated region
    $region38: #{tpu_custom_call.1} parent=1 // pred_check
      _
    $region39: #{tpu_custom_call.1} parent=1 // pred_check_branch
      %71 = sbr.rel (0) target = $region41
    $region40: #{tpu_custom_call.1} parent=1 // pred_region
      %73 = dma.done [#allocation6], 2048
    $region41: #{tpu_custom_call.1} parent=1 // pred_fallthru
      _
    %v74 = vld [vmem:[#allocation2] sm:$0xff]
    %v75 = vld [vmem:[#allocation2 + $0x8] sm:$0xff]
    %v76 = vld [vmem:[#allocation5] sm:$0xff]
    %v77 = vld [vmem:[#allocation5 + $0x8] sm:$0xff]
    %v78 = vld [vmem:[#allocation5 + $0x10] sm:$0xff]
    %v79 = vld [vmem:[#allocation5 + $0x18] sm:$0xff]
    %v80 = vld [vmem:[#allocation5 + $0x20] sm:$0xff]
    %v81 = vld [vmem:[#allocation5 + $0x28] sm:$0xff]
    %v82 = vld [vmem:[#allocation5 + $0x30] sm:$0xff]
    %v83 = vld [vmem:[#allocation5 + $0x38] sm:$0xff]
    %v84 = vld [vmem:[#allocation5 + $0x40] sm:$0xff]
    %v85 = vld [vmem:[#allocation5 + $0x48] sm:$0xff]
    %v86 = vld [vmem:[#allocation5 + $0x50] sm:$0xff]
    %v87 = vld [vmem:[#allocation5 + $0x58] sm:$0xff]
    %v88 = vld [vmem:[#allocation5 + $0x60] sm:$0xff]
    %v89 = vld [vmem:[#allocation5 + $0x68] sm:$0xff]
    %v90 = vld [vmem:[#allocation5 + $0x70] sm:$0xff]
    %v91 = vld [vmem:[#allocation5 + $0x78] sm:$0xff]
    %v92 = vld [vmem:[%s2] sm:$0x1]
    %v94 = vperm.slane %v92, 0
    %96 = vmatpush.msra.mxu0 %v91
    %97 = vmatpush.msra.mxu0 %v90
    %98 = vmatpush.msra.mxu0 %v89
    %99 = vmatpush.msra.mxu0 %v88
    %100 = vmatpush.msra.mxu0 %v87
    %101 = vmatpush.msra.mxu0 %v86
    %102 = vmatpush.msra.mxu0 %v85
    %103 = vmatpush.msra.mxu0 %v84
    %104 = vmatpush.msra.mxu0 %v83
    %105 = vmatpush.msra.mxu0 %v82
    %106 = vmatpush.msra.mxu0 %v81
    %107 = vmatpush.msra.mxu0 %v80
    %108 = vmatpush.msra.mxu0 %v79
    %109 = vmatpush.msra.mxu0 %v78
    %110 = vmatpush.msra.mxu0 %v77
    %111 = vmatpush.msra.mxu0 %v76
    %112 = vmatmul.f32.gmra.mxu0 %v74
    %v113 = vpop.f32.mrf.mxu0
    %v114 = vadd.f32 %v94, %v113
    %115 = vmatmul.f32.gmra.mxu0 %v75
    %v116 = vpop.f32.mrf.mxu0
    %v117 = vadd.f32 %v94, %v116
    %118 = vdwg.mxu0
    %v119 = vlaneseq
    %v120 = vand.u32 %v119, 127
    %vm121 = vcmp.lt.s32.totalorder %v120, 4
    %v122 = vsel %vm121, 1, 0
    %v123 = vcvt.s32.f32 %v122
    %124 = vadd.xlane.f32.xlu0 %v114
    %v125 = vpop.xlane.xlu0 %124
    %126 = vadd.xlane.f32.xlu0 %v117
    %v127 = vpop.xlane.xlu0 %126
    %v128 = vmul.f32 %v125, 0.25
    %v129 = vmul.f32 %v127, 0.25
    %v130 = vsub.f32 %v114, %v128
    %v131 = vsub.f32 %v117, %v129
    %v132 = vmul.f32 %v130, %v123
    %v133 = vmul.f32 %v131, %v123
    %v134 = vmul.f32 %v132, %v132
    %v135 = vmul.f32 %v133, %v133
    %136 = vadd.xlane.f32.xlu0 %v134
    %v137 = vpop.xlane.xlu0 %136
    %138 = vadd.xlane.f32.xlu0 %v135
    %v139 = vpop.xlane.xlu0 %138
    %v140 = vmul.f32 %v137, 0.25
    %v141 = vmul.f32 %v139, 0.25
    %v142 = vadd.f32 %v140, 1e-06
    %v143 = vadd.f32 %v141, 1e-06
    %v144 = vrsqrt.pop %v142
    %v145 = vmul.f32 %v144, %v142
    %v146 = vmul.f32 %v145, %v144
    %v147 = vmul.f32 0.5, %v146
    %v148 = vsub.f32 1.5, %v147
    %v149 = vmul.f32 %v144, %v148
    %vm150 = vweird.f32 %v142
    %vm151 = vweird.f32 %v144
    %vm152 = vmor %vm150, %vm151
    %v153 = vsel %vm152, %v144, %v149
    %v154 = vrsqrt.pop %v143
    %v155 = vmul.f32 %v154, %v143
    %v156 = vmul.f32 %v155, %v154
    %v157 = vmul.f32 0.5, %v156
    %v158 = vsub.f32 1.5, %v157
    %v159 = vmul.f32 %v154, %v158
    %vm160 = vweird.f32 %v143
    %vm161 = vweird.f32 %v154
    %vm162 = vmor %vm160, %vm161
    %v163 = vsel %vm162, %v154, %v159
    %v164 = vld [vmem:[%s3] sm:$0x1]
    %v166 = vperm.slane %v164, 0
    %v168 = vmul.f32 %v153, %v166
    %v169 = vmul.f32 %v163, %v166
    %v170 = vmul.f32 %v132, %v168
    %v171 = vmul.f32 %v133, %v169
    %v172 = vld [vmem:[%s4] sm:$0x1]
    %v174 = vperm.slane %v172, 0
    %v176 = vadd.f32 %v170, %v174
    %v177 = vadd.f32 %v171, %v174
    %v178 = vmul.f32 %v176, 0.5
    %v179 = vmul.f32 %v177, 0.5
    %v180 = vmul.f32 %v176, 0.70710677
    %v181 = vmul.f32 %v177, 0.70710677
    %v182 = vmul.f32 %v180, %v180
    %v183 = vmin.f32 16.0, %v182
    %v184 = vmul.f32 %v183, 2.1237322e-06
    %v185 = vadd.f32 %v184, 0.00028619796
    %v186 = vmul.f32 %v183, %v185
    %v187 = vadd.f32 %v186, 0.0036580483
    %v188 = vmul.f32 %v183, %v187
    %v189 = vadd.f32 %v188, 0.05243302
    %v190 = vmul.f32 %v183, %v189
    %v191 = vadd.f32 %v190, 0.18741608
    %v192 = vmul.f32 %v183, %v191
    %v193 = vadd.f32 %v192, 1.1283791
    %v194 = vmul.f32 %v180, %v193
    %v195 = vmul.f32 %v183, 3.8918573e-05
    %v196 = vadd.f32 %v195, 0.001143296
    %v197 = vmul.f32 %v183, %v196
    %v198 = vadd.f32 %v197, 0.014752088
    %v199 = vmul.f32 %v183, %v198
    %v200 = vadd.f32 %v199, 0.112945676
    %v201 = vmul.f32 %v183, %v200
    %v202 = vadd.f32 %v201, 0.4994258
    %v203 = vmul.f32 %v183, %v202
    %v204 = vadd.f32 %v203, 1.0
    %v205 = vrcp.pop %v204
    %v206 = vmul.f32 %v204, %v205
    %v207 = vsub.f32 1.0, %v206
    %v208 = vmul.f32 %v205, %v207
    %v209 = vadd.f32 %v205, %v208
    %vm210 = vweird.f32 %v204
    %vm211 = vweird.f32 %v205
    %vm212 = vmor %vm210, %vm211
    %v213 = vsel %vm212, %v205, %v209
    %v214 = vand.u32 2147483647, %v204
    %vm215 = vcmp.eq.f32.partialorder %v214, 8.507059e+37
    %v216 = vand.u32 %v204, 2147483648
    %v217 = vor.u32 1.1754944e-38, %v216
    %v218 = vsel %vm215, %v217, %v213
    %v219 = vmul.f32 %v194, %v218
    %v220 = vmin.f32 %v219, 1.0
    %v221 = vmax.f32 %v220, -1.0
    %v222 = vmul.f32 %v181, %v181
    %v223 = vmin.f32 16.0, %v222
    %v224 = vmul.f32 %v223, 2.1237322e-06
    %v225 = vadd.f32 %v224, 0.00028619796
    %v226 = vmul.f32 %v223, %v225
    %v227 = vadd.f32 %v226, 0.0036580483
    %v228 = vmul.f32 %v223, %v227
    %v229 = vadd.f32 %v228, 0.05243302
    %v230 = vmul.f32 %v223, %v229
    %v231 = vadd.f32 %v230, 0.18741608
    %v232 = vmul.f32 %v223, %v231
    %v233 = vadd.f32 %v232, 1.1283791
    %v234 = vmul.f32 %v181, %v233
    %v235 = vmul.f32 %v223, 3.8918573e-05
    %v236 = vadd.f32 %v235, 0.001143296
    %v237 = vmul.f32 %v223, %v236
    %v238 = vadd.f32 %v237, 0.014752088
    %v239 = vmul.f32 %v223, %v238
    %v240 = vadd.f32 %v239, 0.112945676
    %v241 = vmul.f32 %v223, %v240
    %v242 = vadd.f32 %v241, 0.4994258
    %v243 = vmul.f32 %v223, %v242
    %v244 = vadd.f32 %v243, 1.0
    %v245 = vrcp.pop %v244
    %v246 = vmul.f32 %v244, %v245
    %v247 = vsub.f32 1.0, %v246
    %v248 = vmul.f32 %v245, %v247
    %v249 = vadd.f32 %v245, %v248
    %vm250 = vweird.f32 %v244
    %vm251 = vweird.f32 %v245
    %vm252 = vmor %vm250, %vm251
    %v253 = vsel %vm252, %v245, %v249
    %v254 = vand.u32 2147483647, %v244
    %vm255 = vcmp.eq.f32.partialorder %v254, 8.507059e+37
    %v256 = vand.u32 %v244, 2147483648
    %v257 = vor.u32 1.1754944e-38, %v256
    %v258 = vsel %vm255, %v257, %v253
    %v259 = vmul.f32 %v234, %v258
    %v260 = vmin.f32 %v259, 1.0
    %v261 = vmax.f32 %v260, -1.0
    %v262 = vadd.f32 %v221, 1.0
    %v263 = vadd.f32 %v261, 1.0
    %v264 = vmul.f32 %v178, %v262
    %v265 = vmul.f32 %v179, %v263
    %v266 = vld [vmem:[#allocation7] sm:$0xff]
    %v267 = vld [vmem:[#allocation7 + $0x8] sm:$0xff]
    %v268 = vld [vmem:[#allocation7 + $0x10] sm:$0xff]
    %v269 = vld [vmem:[#allocation7 + $0x18] sm:$0xff]
    %v270 = vld [vmem:[#allocation7 + $0x20] sm:$0xff]
    %v271 = vld [vmem:[#allocation7 + $0x28] sm:$0xff]
    %v272 = vld [vmem:[#allocation7 + $0x30] sm:$0xff]
    %v273 = vld [vmem:[#allocation7 + $0x38] sm:$0xff]
    %v274 = vld [vmem:[#allocation7 + $0x40] sm:$0xff]
    %v275 = vld [vmem:[#allocation7 + $0x48] sm:$0xff]
    %v276 = vld [vmem:[#allocation7 + $0x50] sm:$0xff]
    %v277 = vld [vmem:[#allocation7 + $0x58] sm:$0xff]
    %v278 = vld [vmem:[#allocation7 + $0x60] sm:$0xff]
    %v279 = vld [vmem:[#allocation7 + $0x68] sm:$0xff]
    %v280 = vld [vmem:[#allocation7 + $0x70] sm:$0xff]
    %v281 = vld [vmem:[#allocation7 + $0x78] sm:$0xff]
    %v282 = vld [vmem:[%s6] sm:$0x1]
    %v284 = vperm.slane %v282, 0
    %286 = vmatpush.msra.mxu0 %v281
    %287 = vmatpush.msra.mxu0 %v280
    %288 = vmatpush.msra.mxu0 %v279
    %289 = vmatpush.msra.mxu0 %v278
    %290 = vmatpush.msra.mxu0 %v277
    %291 = vmatpush.msra.mxu0 %v276
    %292 = vmatpush.msra.mxu0 %v275
    %293 = vmatpush.msra.mxu0 %v274
    %294 = vmatpush.msra.mxu0 %v273
    %295 = vmatpush.msra.mxu0 %v272
    %296 = vmatpush.msra.mxu0 %v271
    %297 = vmatpush.msra.mxu0 %v270
    %298 = vmatpush.msra.mxu0 %v269
    %299 = vmatpush.msra.mxu0 %v268
    %300 = vmatpush.msra.mxu0 %v267
    %301 = vmatpush.msra.mxu0 %v266
    %302 = vmatmul.f32.gmra.mxu0 %v264
    %v303 = vpop.f32.mrf.mxu0
    %v304 = vadd.f32 %v284, %v303
    %305 = vmatmul.f32.gmra.mxu0 %v265
    %v306 = vpop.f32.mrf.mxu0
    %v307 = vadd.f32 %v284, %v306
    %308 = vdwg.mxu0
    %v309 = vxor.u32 %v304, 2147483648
    %v310 = vxor.u32 %v307, 2147483648
    %v311 = vmul.f32 %v309, 1.442695
    %v312 = vpow.pop %v311
    %v313 = vmul.f32 %v310, 1.442695
    %v314 = vpow.pop %v313
    %v315 = vadd.f32 %v312, 1.0
    %v316 = vadd.f32 %v314, 1.0
    %v317 = vrcp.pop %v315
    %v318 = vmul.f32 %v315, %v317
    %v319 = vsub.f32 1.0, %v318
    %v320 = vmul.f32 %v317, %v319
    %v321 = vadd.f32 %v317, %v320
    %vm322 = vweird.f32 %v315
    %vm323 = vweird.f32 %v317
    %vm324 = vmor %vm322, %vm323
    %v325 = vsel %vm324, %v317, %v321
    %v326 = vand.u32 2147483647, %v315
    %vm327 = vcmp.eq.f32.partialorder %v326, 8.507059e+37
    %v328 = vand.u32 %v315, 2147483648
    %v329 = vor.u32 1.1754944e-38, %v328
    %v330 = vsel %vm327, %v329, %v325
    %v331 = vmul.f32 1.0, %v330
    %v332 = vrcp.pop %v316
    %v333 = vmul.f32 %v316, %v332
    %v334 = vsub.f32 1.0, %v333
    %v335 = vmul.f32 %v332, %v334
    %v336 = vadd.f32 %v332, %v335
    %vm337 = vweird.f32 %v316
    %vm338 = vweird.f32 %v332
    %vm339 = vmor %vm337, %vm338
    %v340 = vsel %vm339, %v332, %v336
    %v341 = vand.u32 2147483647, %v316
    %vm342 = vcmp.eq.f32.partialorder %v341, 8.507059e+37
    %v343 = vand.u32 %v316, 2147483648
    %v344 = vor.u32 1.1754944e-38, %v343
    %v345 = vsel %vm342, %v344, %v340
    %v346 = vmul.f32 1.0, %v345
    %v347 = vmul.f32 %v74, %v331
    %v348 = vmul.f32 %v75, %v346
    %349 = vst [vmem:[#allocation8] sm:$0xff] %v347
    %350 = vst [vmem:[#allocation8 + $0x8] sm:$0xff] %v348
    // Predicated region
    $region42: #{tpu_custom_call.1} parent=1 // pred_check
      _
    $region43: #{tpu_custom_call.1} parent=1 // pred_check_branch
      %352 = sbr.rel (0) target = $region45
    $region44: #{tpu_custom_call.1} parent=1 // pred_region
      %354 = vsyncadd [#allocation4], 0
      %s355 = sshll.u32 [#allocation8], 4
      %s356 = int_to_ptr.vmem [resolvable:$true] %s355
      %s357 = sshll.u32 %s7, 4
      %s358 = int_to_ptr.hbm [resolvable:$true] %s357
      %363 = dma.vmem_to_hbm [thread:$0]  %s356, 256, %s358, [#allocation4], 128, 128, 8
    $region45: #{tpu_custom_call.1} parent=1 // pred_fallthru
      _
    // Predicated region
    $region46: #{tpu_custom_call.1} parent=1 // pred_check
      _
    $region47: #{tpu_custom_call.1} parent=1 // pred_check_branch
      %365 = sbr.rel (0) target = $region49
    $region48: #{tpu_custom_call.1} parent=1 // pred_region
      %367 = dma.done [#allocation4], 256
    $region49: #{tpu_custom_call.1} parent=1 // pred_fallthru
      _
    %368 = vsyncpa [#allocation3], 1
    %369 = vsyncpa [#allocation6], 1
    %370 = vsyncpa [#allocation4], 1

</llo_original>
